<compile_context>
chip_gen: v7x
topology: tpu7x:2x2x1
jax: 0.10.0
libtpu: 0.0.40
codegen_flags: <defaults>
</compile_context>

<pallas_src>
import numpy as np
import jax
import jax.numpy as jnp
from jax.experimental import pallas as pl
from jax.experimental.pallas import tpu as pltpu


def _make_detection_kernel(A, attrs, GG, stride, anchors, is_train):
    """Builds the fused per-batch kernel.  anchors: tuple of (w, h) floats."""

    def kernel(pred_ref, off_ref, out_ref, tmp_ref):
        # pred_ref: (A*attrs, GG)   input slab for one batch element
        # off_ref : (2, GG)         row 0 = x_offset (cell % G), row 1 = y_offset
        # out_ref : (GG, A*attrs)   transposed output slab
        # tmp_ref : (A*attrs, GG)   f32 assembly scratch (VMEM)
        if not is_train:
            off = off_ref[...]                                     # (2, GG)
            is_w_row = jax.lax.broadcasted_iota(jnp.int32, (2, GG), 0) == 0

        for a in range(A):                                         # A is small, unrolled
            r = a * attrs
            # --- x, y: sigmoid (+ grid offset, * stride at inference) ---------
            xy = jax.nn.sigmoid(pred_ref[r:r + 2, :].astype(jnp.float32))
            if is_train:
                tmp_ref[r:r + 2, :] = xy
                # --- w, h pass through raw in training mode -------------------
                tmp_ref[r + 2:r + 4, :] = pred_ref[r + 2:r + 4, :].astype(jnp.float32)
            else:
                tmp_ref[r:r + 2, :] = (xy + off) * stride
                # --- w, h: exp * anchor (scaled_anchor * stride == anchor) ----
                wh = jnp.exp(pred_ref[r + 2:r + 4, :].astype(jnp.float32))
                amul = jnp.where(is_w_row, anchors[a][0], anchors[a][1])
                tmp_ref[r + 2:r + 4, :] = wh * amul
            # --- objectness + class scores: sigmoid ---------------------------
            rest = pred_ref[r + 4:r + attrs, :].astype(jnp.float32)
            tmp_ref[r + 4:r + attrs, :] = jax.nn.sigmoid(rest)

        # (A*attrs, GG) -> (GG, A*attrs): in-kernel transpose so the final
        # PyTorch (B, GG*A, attrs) layout is a metadata-only reshape outside.
        out_ref[...] = tmp_ref[...].T.astype(out_ref.dtype)

    return kernel


def detection_layer(x, anchors, resize_dim, num_classes, is_train=False):
    """Pallas equivalent of DetectionLayer.forward (predict_transform)."""
    B, C, G, G2 = x.shape
    assert G == G2
    A = len(anchors)
    attrs = 5 + num_classes
    assert C == A * attrs
    GG = G * G
    stride = resize_dim // G

    # Metadata-only view: channels split as (anchor, attr), spatial flattened
    # into the lane dimension.  (GG is a multiple of 128 for the demo config;
    # for odd YOLO grids the block still equals the full array dims, which the
    # (8,128) rule allows -- stores just become lane-masked.)
    pred = x.reshape(B, A * attrs, GG)

    # Tiny per-cell grid-offset table (2, GG): gx = cell % G, gy = cell // G.
    cells = jnp.arange(GG, dtype=jnp.int32)
    xy_off = jnp.stack([cells % G, cells // G], axis=0).astype(jnp.float32)

    kernel = _make_detection_kernel(
        A, attrs, GG, float(stride),
        tuple((float(a0), float(a1)) for (a0, a1) in anchors),
        is_train)

    out = pl.pallas_call(
        kernel,
        out_shape=jax.ShapeDtypeStruct((B, GG, A * attrs), x.dtype),
        grid=(B,),
        in_specs=[
            pl.BlockSpec((None, A * attrs, GG), lambda b: (b, 0, 0)),
            pl.BlockSpec((2, GG), lambda b: (0, 0)),   # constant index -> fetched once
        ],
        out_specs=pl.BlockSpec((None, GG, A * attrs), lambda b: (b, 0, 0)),
        scratch_shapes=[pltpu.VMEM((A * attrs, GG), jnp.float32)],
        compiler_params=pltpu.CompilerParams(
            dimension_semantics=("parallel",)),
    )(pred, xy_off)

    # (B, GG, A*attrs) -> (B, GG*A, attrs): pure row-major reshape (no data movement).
    return out.reshape(B, GG * A, attrs)


def reference_detection(x, anchors, resize_dim, num_classes, is_train=False):
    """NumPy port of the original PyTorch predict_transform (source of truth)."""
    x = np.asarray(x, np.float32)
    B, C, G, _ = x.shape
    A = len(anchors)
    attrs = 5 + num_classes
    GG = G * G
    stride = resize_dim // G

    def sigmoid(v):
        return 1.0 / (1.0 + np.exp(-v))

    p = x.reshape(B, attrs * A, GG).transpose(0, 2, 1).reshape(B, GG * A, attrs).copy()
    p[:, :, :2] = sigmoid(p[:, :, :2])
    if not is_train:
        gl = np.arange(G)
        a_, b_ = np.meshgrid(gl, gl)
        xo = a_.reshape(-1, 1).astype(np.float32)
        yo = b_.reshape(-1, 1).astype(np.float32)
        xy = np.concatenate([xo, yo], 1)
        xy = np.tile(xy, (1, A)).reshape(-1, 2)[None]
        p[:, :, :2] += xy
        sa = np.asarray([(a0 / stride, a1 / stride) for (a0, a1) in anchors],
                        np.float32)
        sa = np.tile(sa, (GG, 1))[None]
        p[:, :, 2:4] = np.exp(p[:, :, 2:4]) * sa
        p[:, :, :4] *= stride
    p[:, :, 4] = sigmoid(p[:, :, 4])
    p[:, :, 5:5 + num_classes] = sigmoid(p[:, :, 5:5 + num_classes])
    return p


if __name__ == "__main__":
    # Small deterministic config consistent with the module's forward:
    #   grid 16x16, 3 anchors, 3 classes -> channels = 3 * (5 + 3) = 24
    B, G = 2, 16
    num_classes = 3
    anchors = [(10.0, 13.0), (16.0, 30.0), (33.0, 23.0)]
    resize_dim = 128                       # stride = 128 // 16 = 8
    C = len(anchors) * (5 + num_classes)

    key = jax.random.PRNGKey(0)
    x = jax.random.normal(key, (B, C, G, G), dtype=jnp.float32)

    # Inference path (the module's default behaviour).
    out = detection_layer(x, anchors, resize_dim, num_classes, is_train=False)
    out = jax.block_until_ready(out)
    ref = reference_detection(np.asarray(x), anchors, resize_dim, num_classes,
                              is_train=False)
    np.testing.assert_allclose(np.asarray(out), ref, rtol=1e-5, atol=1e-5)

    # Training path (offsets / anchor scaling skipped).
    out_tr = detection_layer(x, anchors, resize_dim, num_classes, is_train=True)
    out_tr = jax.block_until_ready(out_tr)
    ref_tr = reference_detection(np.asarray(x), anchors, resize_dim, num_classes,
                                 is_train=True)
    np.testing.assert_allclose(np.asarray(out_tr), ref_tr, rtol=1e-5, atol=1e-5)

    print("KERNEL_OK")
</pallas_src>

<mosaic_0001>
module attributes {stable_mosaic.version = 11 : i64} {
  func.func @kernel(%arg0: i32, %arg1: memref<1x24x256xf32, #tpu.memory_space<vmem>>, %arg2: memref<2x256xf32, #tpu.memory_space<vmem>>, %arg3: memref<1x256x24xf32, #tpu.memory_space<vmem>>, %arg4: memref<24x256xf32, #tpu.memory_space<vmem>>) attributes {dimension_semantics = [#tpu.dimension_semantics<parallel>], iteration_bounds = array<i64: 2>, scalar_prefetch = 0 : i64, scratch_operands = 1 : i64, tpu.core_type = #tpu.core_type<tc>, window_params = [{transform_indices = @transform_0, window_bounds = array<i64: 1, 24, 256>}, {pipeline_mode = #tpu.pipeline_mode<synchronous>, transform_indices = @transform_1, window_bounds = array<i64: 2, 256>}, {transform_indices = @transform_2, window_bounds = array<i64: 1, 256, 24>}]} {
    %c0 = arith.constant 0 : index
    %c0_0 = arith.constant 0 : index
    %0 = vector.load %arg2[%c0, %c0_0] : memref<2x256xf32, #tpu.memory_space<vmem>>, vector<2x256xf32>
    %1 = tpu.iota {dimensions = array<i32: 0>} : vector<2x256xi32>
    %c0_i32 = arith.constant 0 : i32
    %2 = vector.broadcast %c0_i32 : i32 to vector<2x256xi32>
    %3 = arith.cmpi eq, %1, %2 : vector<2x256xi32>
    %c0_1 = arith.constant 0 : index
    %c0_2 = arith.constant 0 : index
    %c0_3 = arith.constant 0 : index
    %4 = vector.load %arg1[%c0_1, %c0_2, %c0_3] : memref<1x24x256xf32, #tpu.memory_space<vmem>>, vector<1x2x256xf32>
    %5 = vector.shape_cast %4 : vector<1x2x256xf32> to vector<2x256xf32>
    %6 = arith.negf %5 : vector<2x256xf32>
    %7 = math.exp %6 : vector<2x256xf32>
    %cst = arith.constant 1.000000e+00 : f32
    %8 = vector.broadcast %cst : f32 to vector<2x256xf32>
    %9 = arith.addf %8, %7 : vector<2x256xf32>
    %10 = arith.divf %8, %9 : vector<2x256xf32>
    %11 = arith.addf %10, %0 : vector<2x256xf32>
    %cst_4 = arith.constant 8.000000e+00 : f32
    %12 = vector.broadcast %cst_4 : f32 to vector<2x256xf32>
    %13 = arith.mulf %11, %12 : vector<2x256xf32>
    %c0_5 = arith.constant 0 : index
    %c0_6 = arith.constant 0 : index
    %14 = vector.load %arg4[%c0_5, %c0_6] : memref<24x256xf32, #tpu.memory_space<vmem>>, vector<2x256xf32>
    tpu.vector_store %arg4[%c0_5, %c0_6], %13 {strides = array<i32>} : memref<24x256xf32, #tpu.memory_space<vmem>>, vector<2x256xf32>,
    %c0_7 = arith.constant 0 : index
    %c2 = arith.constant 2 : index
    %c0_8 = arith.constant 0 : index
    %15 = vector.load %arg1[%c0_7, %c2, %c0_8] : memref<1x24x256xf32, #tpu.memory_space<vmem>>, vector<1x2x256xf32>
    %16 = vector.shape_cast %15 : vector<1x2x256xf32> to vector<2x256xf32>
    %17 = math.exp %16 : vector<2x256xf32>
    %cst_9 = arith.constant 1.000000e+01 : f32
    %cst_10 = arith.constant 1.300000e+01 : f32
    %18 = vector.broadcast %cst_9 : f32 to vector<2x256xf32>
    %19 = vector.broadcast %cst_10 : f32 to vector<2x256xf32>
    %20 = arith.select %3, %18, %19 : vector<2x256xi1>, vector<2x256xf32>
    %21 = arith.mulf %17, %20 : vector<2x256xf32>
    %c2_11 = arith.constant 2 : index
    %c0_12 = arith.constant 0 : index
    %22 = vector.load %arg4[%c2_11, %c0_12] : memref<24x256xf32, #tpu.memory_space<vmem>>, vector<2x256xf32>
    tpu.vector_store %arg4[%c2_11, %c0_12], %21 {strides = array<i32>} : memref<24x256xf32, #tpu.memory_space<vmem>>, vector<2x256xf32>,
    %c0_13 = arith.constant 0 : index
    %c4 = arith.constant 4 : index
    %c0_14 = arith.constant 0 : index
    %23 = vector.load %arg1[%c0_13, %c4, %c0_14] : memref<1x24x256xf32, #tpu.memory_space<vmem>>, vector<1x4x256xf32>
    %24 = vector.shape_cast %23 : vector<1x4x256xf32> to vector<4x256xf32>
    %25 = arith.negf %24 : vector<4x256xf32>
    %26 = math.exp %25 : vector<4x256xf32>
    %cst_15 = arith.constant 1.000000e+00 : f32
    %27 = vector.broadcast %cst_15 : f32 to vector<4x256xf32>
    %28 = arith.addf %27, %26 : vector<4x256xf32>
    %29 = arith.divf %27, %28 : vector<4x256xf32>
    %c4_16 = arith.constant 4 : index
    %c0_17 = arith.constant 0 : index
    %30 = vector.load %arg4[%c4_16, %c0_17] : memref<24x256xf32, #tpu.memory_space<vmem>>, vector<4x256xf32>
    tpu.vector_store %arg4[%c4_16, %c0_17], %29 {strides = array<i32>} : memref<24x256xf32, #tpu.memory_space<vmem>>, vector<4x256xf32>,
    %c0_18 = arith.constant 0 : index
    %c8 = arith.constant 8 : index
    %c0_19 = arith.constant 0 : index
    %31 = vector.load %arg1[%c0_18, %c8, %c0_19] : memref<1x24x256xf32, #tpu.memory_space<vmem>>, vector<1x2x256xf32>
    %32 = vector.shape_cast %31 : vector<1x2x256xf32> to vector<2x256xf32>
    %33 = arith.negf %32 : vector<2x256xf32>
    %34 = math.exp %33 : vector<2x256xf32>
    %cst_20 = arith.constant 1.000000e+00 : f32
    %35 = vector.broadcast %cst_20 : f32 to vector<2x256xf32>
    %36 = arith.addf %35, %34 : vector<2x256xf32>
    %37 = arith.divf %35, %36 : vector<2x256xf32>
    %38 = arith.addf %37, %0 : vector<2x256xf32>
    %cst_21 = arith.constant 8.000000e+00 : f32
    %39 = vector.broadcast %cst_21 : f32 to vector<2x256xf32>
    %40 = arith.mulf %38, %39 : vector<2x256xf32>
    %c8_22 = arith.constant 8 : index
    %c0_23 = arith.constant 0 : index
    %41 = vector.load %arg4[%c8_22, %c0_23] : memref<24x256xf32, #tpu.memory_space<vmem>>, vector<2x256xf32>
    tpu.vector_store %arg4[%c8_22, %c0_23], %40 {strides = array<i32>} : memref<24x256xf32, #tpu.memory_space<vmem>>, vector<2x256xf32>,
    %c0_24 = arith.constant 0 : index
    %c10 = arith.constant 10 : index
    %c0_25 = arith.constant 0 : index
    %42 = vector.load %arg1[%c0_24, %c10, %c0_25] : memref<1x24x256xf32, #tpu.memory_space<vmem>>, vector<1x2x256xf32>
    %43 = vector.shape_cast %42 : vector<1x2x256xf32> to vector<2x256xf32>
    %44 = math.exp %43 : vector<2x256xf32>
    %cst_26 = arith.constant 1.600000e+01 : f32
    %cst_27 = arith.constant 3.000000e+01 : f32
    %45 = vector.broadcast %cst_26 : f32 to vector<2x256xf32>
    %46 = vector.broadcast %cst_27 : f32 to vector<2x256xf32>
    %47 = arith.select %3, %45, %46 : vector<2x256xi1>, vector<2x256xf32>
    %48 = arith.mulf %44, %47 : vector<2x256xf32>
    %c10_28 = arith.constant 10 : index
    %c0_29 = arith.constant 0 : index
    %49 = vector.load %arg4[%c10_28, %c0_29] : memref<24x256xf32, #tpu.memory_space<vmem>>, vector<2x256xf32>
    tpu.vector_store %arg4[%c10_28, %c0_29], %48 {strides = array<i32>} : memref<24x256xf32, #tpu.memory_space<vmem>>, vector<2x256xf32>,
    %c0_30 = arith.constant 0 : index
    %c12 = arith.constant 12 : index
    %c0_31 = arith.constant 0 : index
    %50 = vector.load %arg1[%c0_30, %c12, %c0_31] : memref<1x24x256xf32, #tpu.memory_space<vmem>>, vector<1x4x256xf32>
    %51 = vector.shape_cast %50 : vector<1x4x256xf32> to vector<4x256xf32>
    %52 = arith.negf %51 : vector<4x256xf32>
    %53 = math.exp %52 : vector<4x256xf32>
    %cst_32 = arith.constant 1.000000e+00 : f32
    %54 = vector.broadcast %cst_32 : f32 to vector<4x256xf32>
    %55 = arith.addf %54, %53 : vector<4x256xf32>
    %56 = arith.divf %54, %55 : vector<4x256xf32>
    %c12_33 = arith.constant 12 : index
    %c0_34 = arith.constant 0 : index
    %57 = vector.load %arg4[%c12_33, %c0_34] : memref<24x256xf32, #tpu.memory_space<vmem>>, vector<4x256xf32>
    tpu.vector_store %arg4[%c12_33, %c0_34], %56 {strides = array<i32>} : memref<24x256xf32, #tpu.memory_space<vmem>>, vector<4x256xf32>,
    %c0_35 = arith.constant 0 : index
    %c16 = arith.constant 16 : index
    %c0_36 = arith.constant 0 : index
    %58 = vector.load %arg1[%c0_35, %c16, %c0_36] : memref<1x24x256xf32, #tpu.memory_space<vmem>>, vector<1x2x256xf32>
    %59 = vector.shape_cast %58 : vector<1x2x256xf32> to vector<2x256xf32>
    %60 = arith.negf %59 : vector<2x256xf32>
    %61 = math.exp %60 : vector<2x256xf32>
    %cst_37 = arith.constant 1.000000e+00 : f32
    %62 = vector.broadcast %cst_37 : f32 to vector<2x256xf32>
    %63 = arith.addf %62, %61 : vector<2x256xf32>
    %64 = arith.divf %62, %63 : vector<2x256xf32>
    %65 = arith.addf %64, %0 : vector<2x256xf32>
    %cst_38 = arith.constant 8.000000e+00 : f32
    %66 = vector.broadcast %cst_38 : f32 to vector<2x256xf32>
    %67 = arith.mulf %65, %66 : vector<2x256xf32>
    %c16_39 = arith.constant 16 : index
    %c0_40 = arith.constant 0 : index
    %68 = vector.load %arg4[%c16_39, %c0_40] : memref<24x256xf32, #tpu.memory_space<vmem>>, vector<2x256xf32>
    tpu.vector_store %arg4[%c16_39, %c0_40], %67 {strides = array<i32>} : memref<24x256xf32, #tpu.memory_space<vmem>>, vector<2x256xf32>,
    %c0_41 = arith.constant 0 : index
    %c18 = arith.constant 18 : index
    %c0_42 = arith.constant 0 : index
    %69 = vector.load %arg1[%c0_41, %c18, %c0_42] : memref<1x24x256xf32, #tpu.memory_space<vmem>>, vector<1x2x256xf32>
    %70 = vector.shape_cast %69 : vector<1x2x256xf32> to vector<2x256xf32>
    %71 = math.exp %70 : vector<2x256xf32>
    %cst_43 = arith.constant 3.300000e+01 : f32
    %cst_44 = arith.constant 2.300000e+01 : f32
    %72 = vector.broadcast %cst_43 : f32 to vector<2x256xf32>
    %73 = vector.broadcast %cst_44 : f32 to vector<2x256xf32>
    %74 = arith.select %3, %72, %73 : vector<2x256xi1>, vector<2x256xf32>
    %75 = arith.mulf %71, %74 : vector<2x256xf32>
    %c18_45 = arith.constant 18 : index
    %c0_46 = arith.constant 0 : index
    %76 = vector.load %arg4[%c18_45, %c0_46] : memref<24x256xf32, #tpu.memory_space<vmem>>, vector<2x256xf32>
    tpu.vector_store %arg4[%c18_45, %c0_46], %75 {strides = array<i32>} : memref<24x256xf32, #tpu.memory_space<vmem>>, vector<2x256xf32>,
    %c0_47 = arith.constant 0 : index
    %c20 = arith.constant 20 : index
    %c0_48 = arith.constant 0 : index
    %77 = vector.load %arg1[%c0_47, %c20, %c0_48] : memref<1x24x256xf32, #tpu.memory_space<vmem>>, vector<1x4x256xf32>
    %78 = vector.shape_cast %77 : vector<1x4x256xf32> to vector<4x256xf32>
    %79 = arith.negf %78 : vector<4x256xf32>
    %80 = math.exp %79 : vector<4x256xf32>
    %cst_49 = arith.constant 1.000000e+00 : f32
    %81 = vector.broadcast %cst_49 : f32 to vector<4x256xf32>
    %82 = arith.addf %81, %80 : vector<4x256xf32>
    %83 = arith.divf %81, %82 : vector<4x256xf32>
    %c20_50 = arith.constant 20 : index
    %c0_51 = arith.constant 0 : index
    %84 = vector.load %arg4[%c20_50, %c0_51] : memref<24x256xf32, #tpu.memory_space<vmem>>, vector<4x256xf32>
    tpu.vector_store %arg4[%c20_50, %c0_51], %83 {strides = array<i32>} : memref<24x256xf32, #tpu.memory_space<vmem>>, vector<4x256xf32>,
    %c0_52 = arith.constant 0 : index
    %c0_53 = arith.constant 0 : index
    %85 = vector.load %arg4[%c0_52, %c0_53] : memref<24x256xf32, #tpu.memory_space<vmem>>, vector<24x256xf32>
    %86 = tpu.transpose %85, [1, 0] : vector<24x256xf32> -> vector<256x24xf32>
    %c0_54 = arith.constant 0 : index
    %c0_55 = arith.constant 0 : index
    %c0_56 = arith.constant 0 : index
    %87 = vector.load %arg3[%c0_54, %c0_55, %c0_56] : memref<1x256x24xf32, #tpu.memory_space<vmem>>, vector<1x256x24xf32>
    %88 = vector.shape_cast %87 : vector<1x256x24xf32> to vector<256x24xf32>
    %89 = vector.shape_cast %86 : vector<256x24xf32> to vector<1x256x24xf32>
    tpu.vector_store %arg3[%c0_54, %c0_55, %c0_56], %89 {strides = array<i32>} : memref<1x256x24xf32, #tpu.memory_space<vmem>>, vector<1x256x24xf32>,
    return
  }
  func.func @transform_0(%arg0: i32) -> (i32, i32, i32) {
    %c0_i32 = arith.constant 0 : i32
    %c0_i32_0 = arith.constant 0 : i32
    %c0_i32_1 = arith.constant 0 : i32
    return %arg0, %c0_i32, %c0_i32_0 : i32, i32, i32
  }
  func.func @transform_1(%arg0: i32) -> (i32, i32) {
    %c0_i32 = arith.constant 0 : i32
    %c0_i32_0 = arith.constant 0 : i32
    %c0_i32_1 = arith.constant 0 : i32
    return %c0_i32, %c0_i32_0 : i32, i32
  }
  func.func @transform_2(%arg0: i32) -> (i32, i32, i32) {
    %c0_i32 = arith.constant 0 : i32
    %c0_i32_0 = arith.constant 0 : i32
    %c0_i32_1 = arith.constant 0 : i32
    return %arg0, %c0_i32, %c0_i32_0 : i32, i32, i32
  }
}

</mosaic_0001>

<llo_original>
// kernel: tpu_custom_call.1
$region0: #{tpu_custom_call.1}
  #allocation0 [shape = 'u32[]', space=smem, size = 0x4, offset = 0x4, fixed_abs, tag = 'smem constant byte address 0x4 - core index']
  #allocation1 [shape = 'u32[144,128]{1,0:T(1,128)}', space=vmem, size = 0x12000, scoped, tag = 'internal scratch']
  #allocation2 [shape = 'f32[24,256]{1,0:T(8,128)}', space=vmem, size = 0x6000, scoped, tag = 'scratch operand']
  %s0 = inlined_call_operand.hbm [shape: f32[2,24,256], index: 0, kind: input, shape index: {}]
  %s1 = inlined_call_operand.hbm [shape: f32[2,256], index: 1, kind: input, shape index: {}]
  %s2 = inlined_call_operand.vmem [shape: f32[2,256,24], index: 2, kind: output, shape index: {}]
  %s3 = sld [smem:[#allocation0]]
  $region49: #{tpu_custom_call.1} parent=0
    _
  %s5 = ssub.s32 1, %s3
  %s6 = scalar_select 0, %s5, %s3
  $region1: #{tpu_custom_call.1} parent=0
    #allocation3 [shape = 'u8[49152]{0}', space=vmem, size = 0xc000, scoped, tag = 'input window, operand 0']
    #allocation4 [shape = 's32[2]{0}', space=sflag, size = 0x8, scoped, tag = 'scoped memory for tpu_custom_call.1']
    #allocation5 [shape = 'u8[2048]{0}', space=vmem, size = 0x800, scoped, tag = 'input window, operand 1, single buffered']
    #allocation6 [shape = 's32[1]{0}', space=sflag, size = 0x4, scoped, tag = 'scoped memory for tpu_custom_call.1']
    %7 = vsyncpa [#allocation4], 0
    %s8 = scalar_lea.sflag [#allocation4], 1
    %9 = vsyncpa %s8, 0
    %10 = vsyncpa [#allocation6], 0
    loop: start=0, step=1, limit=4
    $region2: #{tpu_custom_call.1} parent=1 // loop_pre_header
      _
    $region3: #{tpu_custom_call.1} parent=1 // loop_header
      %s12 = sphi 0, %s16
      %p13 = scmp.ge.s32.totalorder %s12, 4
      %s22 = sphi 0, %s24
      %s25 = sphi 0, %s22
      %s26 = sphi 0, %s25
      %s42 = sphi 0, %s26
      %s46 = sphi 0, %s46
      %s48 = sphi 0, %s46
      %s49 = sphi 0, %s48
      %s63 = sphi 0, %s49
      %s69 = sphi 0, %s71
      %s72 = sphi 0, %s69
      %s73 = sphi 0, %s72
      %s89 = sphi 0, %s73
    $region4: #{tpu_custom_call.1} parent=1 // loop_header_branch
      %15 = sbr.rel (%p13) target = $region8
    $region5: #{tpu_custom_call.1} parent=1 // loop_body
      %s17 = ssub.s32 %s12, 1
      %s18 = ssub.s32 %s12, 2
      %s19 = sadd.s32 %s12, 1
      %s20 = ssub.s32 %s12, %s19
      %p21 = scmp.eq.s32.totalorder %s20, 0
      %s23 = sadd.s32 %s22, 1
      %s24 = scalar_select %p21, %s22, %s23
      %p27 = pneg %p21
      %p28 = scmp.eq.s32.totalorder %s12, 1
      %p29 = por %p27, %p28
      %p30 = scmp.ne.s32.totalorder %s22, %s25
      %p31 = scmp.eq.s32.totalorder %s12, 0
      %p32 = por %p30, %p31
      %p33 = scmp.ne.s32.totalorder %s22, %s25
      %p34 = scmp.eq.s32.totalorder %s17, 1
      %p35 = por %p33, %p34
      %p36 = scmp.ne.s32.totalorder %s25, %s26
      %p37 = scmp.eq.s32.totalorder %s17, 0
      %p38 = por %p36, %p37
      %p39 = scmp.ne.s32.totalorder %s25, %s26
      %p40 = scmp.eq.s32.totalorder %s18, 1
      %p41 = por %p39, %p40
      %p43 = scmp.ne.s32.totalorder %s26, %s42
      %p44 = scmp.eq.s32.totalorder %s18, 0
      %p45 = por %p43, %p44
      %s47 = sadd.s32 %s46, 1
      %p50 = scmp.eq.s32.totalorder %s12, 1
      %p51 = scmp.ne.s32.totalorder %s46, %s48
      %p52 = scmp.eq.s32.totalorder %s12, 0
      %p53 = por %p51, %p52
      %p54 = scmp.ne.s32.totalorder %s46, %s48
      %p55 = scmp.eq.s32.totalorder %s17, 1
      %p56 = por %p54, %p55
      %p57 = scmp.ne.s32.totalorder %s48, %s49
      %p58 = scmp.eq.s32.totalorder %s17, 0
      %p59 = por %p57, %p58
      %p60 = scmp.ne.s32.totalorder %s48, %s49
      %p61 = scmp.eq.s32.totalorder %s18, 1
      %p62 = por %p60, %p61
      %p64 = scmp.ne.s32.totalorder %s49, %s63
      %p65 = scmp.eq.s32.totalorder %s18, 0
      %p66 = por %p64, %p65
      %s67 = ssub.s32 %s12, %s19
      %p68 = scmp.eq.s32.totalorder %s67, 0
      %s70 = sadd.s32 %s69, 1
      %s71 = scalar_select %p68, %s69, %s70
      %p74 = pneg %p68
      %p75 = scmp.eq.s32.totalorder %s12, 1
      %p76 = por %p74, %p75
      %p77 = scmp.ne.s32.totalorder %s69, %s72
      %p78 = scmp.eq.s32.totalorder %s12, 0
      %p79 = por %p77, %p78
      %p80 = scmp.ne.s32.totalorder %s69, %s72
      %p81 = scmp.eq.s32.totalorder %s17, 1
      %p82 = por %p80, %p81
      %p83 = scmp.ne.s32.totalorder %s72, %s73
      %p84 = scmp.eq.s32.totalorder %s17, 0
      %p85 = por %p83, %p84
      %p86 = scmp.ne.s32.totalorder %s72, %s73
      %p87 = scmp.eq.s32.totalorder %s18, 1
      %p88 = por %p86, %p87
      %p90 = scmp.ne.s32.totalorder %s73, %s89
      %p91 = scmp.eq.s32.totalorder %s18, 0
      %p92 = por %p90, %p91
      %p93 = scmp.le.s32.totalorder 1, %s12
      %p94 = scmp.lt.s32.totalorder %s12, 3
      %p95 = pnand %p93, %p94
      %p96 = pneg %p95
      // Predicated region
      $region9: #{tpu_custom_call.1} parent=5 // pred_check
        _
      $region10: #{tpu_custom_call.1} parent=5 // pred_check_branch
        %98 = sbr.rel (%p95) target = $region12
      $region11: #{tpu_custom_call.1} parent=5 // pred_region
        %s99 = ssub.s32 %s12, 1
        // Predicated region
        $region13: #{tpu_custom_call.1} parent=11 // pred_check
          %p100 = pneg %p59
        $region14: #{tpu_custom_call.1} parent=11 // pred_check_branch
          %102 = sbr.rel (%p100) target = $region16
        $region15: #{tpu_custom_call.1} parent=11 // pred_region
          %s104 = ssub.s32 64, 64
          %105 = vsyncadd [#allocation6], %s104
          %s107 = sshll.u32 [#allocation5], 4
          %s108 = int_to_ptr.vmem [resolvable:$true] %s107
          %110 = dma.hbm_to_vmem [thread:$0]  %s1, 64, %s108, [#allocation6]
        $region16: #{tpu_custom_call.1} parent=11 // pred_fallthru
          _
      $region12: #{tpu_custom_call.1} parent=5 // pred_fallthru
        _
      %p111 = scmp.lt.s32.totalorder %s12, 2
      // Predicated region
      $region17: #{tpu_custom_call.1} parent=5 // pred_check
        %p112 = pneg %p111
      $region18: #{tpu_custom_call.1} parent=5 // pred_check_branch
        %114 = sbr.rel (%p112) target = $region20
      $region19: #{tpu_custom_call.1} parent=5 // pred_region
        // Predicated region
        $region21: #{tpu_custom_call.1} parent=19 // pred_check
          %p115 = pneg %p32
        $region22: #{tpu_custom_call.1} parent=19 // pred_check_branch
          %117 = sbr.rel (%p115) target = $region24
        $region23: #{tpu_custom_call.1} parent=19 // pred_region
          %s118 = sand.u32 %s22, 1
          %s119 = scalar_lea.sflag [#allocation4], %s118
          %s120 = sand.u32 %s22, 1
          %s121 = smul.addr %s120, 48
          %s122 = scalar_lea.vmem [#allocation3], %s121
          %s124 = ssub.s32 768, 768
          %125 = vsyncadd %s119, %s124
          %s126 = smul.addr %s12, 6
          %s127 = smul.addr %s126, 128
          %s128 = scalar_lea.hbm %s0, %s127
          %s129 = sshll.u32 %s122, 4
          %s130 = int_to_ptr.vmem [resolvable:$true] %s129
          %135 = dma.hbm_to_vmem [thread:$0]  %s128, 768, %s130, %s119, 256, 256, 16
        $region24: #{tpu_custom_call.1} parent=19 // pred_fallthru
          _
      $region20: #{tpu_custom_call.1} parent=5 // pred_fallthru
        _
      %p136 = scmp.le.s32.totalorder 1, %s12
      %p137 = scmp.lt.s32.totalorder %s12, 3
      %p138 = pnand %p136, %p137
      %p139 = pneg %p138
      // Predicated region
      $region25: #{tpu_custom_call.1} parent=5 // pred_check
        _
      $region26: #{tpu_custom_call.1} parent=5 // pred_check_branch
        %141 = sbr.rel (%p138) target = $region28
      $region27: #{tpu_custom_call.1} parent=5 // pred_region
        %s142 = ssub.s32 %s12, 1
        %s143 = sand.u32 %s25, 1
        %s144 = scalar_lea.sflag [#allocation4], %s143
        %s145 = sand.u32 %s25, 1
        %s146 = smul.addr %s145, 48
        %s147 = scalar_lea.vmem [#allocation3], %s146
        // Predicated region
        $region29: #{tpu_custom_call.1} parent=27 // pred_check
          %p148 = pneg %p38
        $region30: #{tpu_custom_call.1} parent=27 // pred_check_branch
          %150 = sbr.rel (%p148) target = $region32
        $region31: #{tpu_custom_call.1} parent=27 // pred_region
          %151 = dma.done %s144, 768
        $region32: #{tpu_custom_call.1} parent=27 // pred_fallthru
          _
        // Predicated region
        $region33: #{tpu_custom_call.1} parent=27 // pred_check
          %p152 = pneg %p59
        $region34: #{tpu_custom_call.1} parent=27 // pred_check_branch
          %154 = sbr.rel (%p152) target = $region36
        $region35: #{tpu_custom_call.1} parent=27 // pred_region
          %155 = dma.done [#allocation6], 64
        $region36: #{tpu_custom_call.1} parent=27 // pred_fallthru
          _
        %s156 = sand.u32 %s25, 1
        %s157 = scalar_lea.sflag [#allocation4], %s156
        %s158 = sand.u32 %s25, 1
        %s159 = smul.addr %s158, 48
        %s160 = scalar_lea.vmem [#allocation3], %s159
        %p161 = pneg %p38
        %p162 = pneg %p35
        %p163 = pneg %p59
        %p164 = pneg %p56
        %p165 = pneg %p85
        %p166 = pneg %p82
        %p167 = scmp.lt.s32.totalorder %s17, 1
        %s168 = scalar_select %p167, %s17, 1
        %s169 = smul.addr %s168, 32
        %s170 = smul.addr %s169, 8
        %s171 = scalar_lea.vmem %s2, %s170
        %p172 = scmp.lt.s32.totalorder %s17, 1
        %s173 = scalar_select %p172, %s17, 1
        %s174 = smul.addr %s173, 32
        %s175 = smul.addr %s174, 8
        %s176 = scalar_lea.vmem %s2, %s175
        %v177 = vld [vmem:[#allocation5] sm:$0xf]
        %v178 = vlaneseq
        %v179 = vshrl.u32 %v178, 7
        %vm180 = vcmp.eq.s32.totalorder %v179, 0
        %v181 = vld [vmem:[%s147] sm:$0x3]
        %v182 = vld [vmem:[%s147 + $0x8] sm:$0x3]
        %v183 = vxor.u32 %v181, 2147483648
        %v184 = vxor.u32 %v182, 2147483648
        %v185 = vmul.f32 %v183, 1.442695
        %v186 = vpow.pop %v185
        %v187 = vmul.f32 %v184, 1.442695
        %v188 = vpow.pop %v187
        %v189 = vadd.f32 %v186, 1.0
        %v190 = vadd.f32 %v188, 1.0
        %v191 = vrcp.pop %v189
        %v192 = vmul.f32 1.0, %v191
        %v193 = vrcp.pop %v190
        %v194 = vmul.f32 1.0, %v193
        %v197 = vunpack.c.l.s4 1983009808
        %v198 = vunpack.c.0.s8 %v197
        %v199 = vlaneseq
        %v200 = vshrl.u32 %v199, 7
        %v201 = vsub.s32 %v198, %v200
        %v202 = vrot.slane %v177, %v201
        %v203 = vcombine.high %v202, %v202
        %v206 = vadd.f32 %v192, %v202
        %v207 = vadd.f32 %v194, %v203
        %v208 = vmul.f32 %v206, 8.0
        %v209 = vmul.f32 %v207, 8.0
        %210 = vst [vmem:[#allocation2] sm:$0x3] %v208
        %211 = vst [vmem:[#allocation2 + $0x8] sm:$0x3] %v209
        %v212 = vld [vmem:[%s147] sm:$0xc]
        %v213 = vld [vmem:[%s147 + $0x8] sm:$0xc]
        %v214 = vmul.f32 %v212, 1.442695
        %v215 = vpow.pop %v214
        %v216 = vmul.f32 %v213, 1.442695
        %v217 = vpow.pop %v216
        %v218 = vsel %vm180, 10.0, 13.0
        %v220 = vrot.slane %v218, 6
        %v222 = vmul.f32 %v215, %v220
        %v223 = vmul.f32 %v217, %v220
        %224 = vst [vmem:[#allocation2] sm:$0xc] %v222
        %225 = vst [vmem:[#allocation2 + $0x8] sm:$0xc] %v223
        %v226 = vld [vmem:[%s147] sm:$0xf0]
        %v227 = vld [vmem:[%s147 + $0x8] sm:$0xf0]
        %v228 = vxor.u32 %v226, 2147483648
        %v229 = vxor.u32 %v227, 2147483648
        %v230 = vmul.f32 %v228, 1.442695
        %v231 = vpow.pop %v230
        %v232 = vmul.f32 %v229, 1.442695
        %v233 = vpow.pop %v232
        %v234 = vadd.f32 %v231, 1.0
        %v235 = vadd.f32 %v233, 1.0
        %v236 = vrcp.pop %v234
        %v237 = vmul.f32 1.0, %v236
        %v238 = vrcp.pop %v235
        %v239 = vmul.f32 1.0, %v238
        %240 = vst [vmem:[#allocation2] sm:$0xf0] %v237
        %241 = vst [vmem:[#allocation2 + $0x8] sm:$0xf0] %v239
        %v242 = vld [vmem:[%s147 + $0x10] sm:$0x3]
        %v243 = vld [vmem:[%s147 + $0x18] sm:$0x3]
        %v244 = vxor.u32 %v242, 2147483648
        %v245 = vxor.u32 %v243, 2147483648
        %v246 = vmul.f32 %v244, 1.442695
        %v247 = vpow.pop %v246
        %v248 = vmul.f32 %v245, 1.442695
        %v249 = vpow.pop %v248
        %v250 = vadd.f32 %v247, 1.0
        %v251 = vadd.f32 %v249, 1.0
        %v252 = vrcp.pop %v250
        %v253 = vmul.f32 1.0, %v252
        %v254 = vrcp.pop %v251
        %v255 = vmul.f32 1.0, %v254
        %v256 = vadd.f32 %v253, %v202
        %v257 = vadd.f32 %v255, %v203
        %v258 = vmul.f32 %v256, 8.0
        %v259 = vmul.f32 %v257, 8.0
        %260 = vst [vmem:[#allocation2 + $0x10] sm:$0x3] %v258
        %261 = vst [vmem:[#allocation2 + $0x18] sm:$0x3] %v259
        %v262 = vld [vmem:[%s147 + $0x10] sm:$0xc]
        %v263 = vld [vmem:[%s147 + $0x18] sm:$0xc]
        %v264 = vmul.f32 %v262, 1.442695
        %v265 = vpow.pop %v264
        %v266 = vmul.f32 %v263, 1.442695
        %v267 = vpow.pop %v266
        %v268 = vsel %vm180, 16.0, 30.0
        %v270 = vrot.slane %v268, 6
        %v272 = vmul.f32 %v265, %v270
        %v273 = vmul.f32 %v267, %v270
        %274 = vst [vmem:[#allocation2 + $0x10] sm:$0xc] %v272
        %275 = vst [vmem:[#allocation2 + $0x18] sm:$0xc] %v273
        %v276 = vld [vmem:[%s147 + $0x10] sm:$0xf0]
        %v277 = vld [vmem:[%s147 + $0x18] sm:$0xf0]
        %v278 = vxor.u32 %v276, 2147483648
        %v279 = vxor.u32 %v277, 2147483648
        %v280 = vmul.f32 %v278, 1.442695
        %v281 = vpow.pop %v280
        %v282 = vmul.f32 %v279, 1.442695
        %v283 = vpow.pop %v282
        %v284 = vadd.f32 %v281, 1.0
        %v285 = vadd.f32 %v283, 1.0
        %v286 = vrcp.pop %v284
        %v287 = vmul.f32 1.0, %v286
        %v288 = vrcp.pop %v285
        %v289 = vmul.f32 1.0, %v288
        %290 = vst [vmem:[#allocation2 + $0x10] sm:$0xf0] %v287
        %291 = vst [vmem:[#allocation2 + $0x18] sm:$0xf0] %v289
        %v292 = vld [vmem:[%s147 + $0x20] sm:$0x3]
        %v293 = vld [vmem:[%s147 + $0x28] sm:$0x3]
        %v294 = vxor.u32 %v292, 2147483648
        %v295 = vxor.u32 %v293, 2147483648
        %v296 = vmul.f32 %v294, 1.442695
        %v297 = vpow.pop %v296
        %v298 = vmul.f32 %v295, 1.442695
        %v299 = vpow.pop %v298
        %v300 = vadd.f32 %v297, 1.0
        %v301 = vadd.f32 %v299, 1.0
        %v302 = vrcp.pop %v300
        %v303 = vmul.f32 1.0, %v302
        %v304 = vrcp.pop %v301
        %v305 = vmul.f32 1.0, %v304
        %v306 = vadd.f32 %v303, %v202
        %v307 = vadd.f32 %v305, %v203
        %v308 = vmul.f32 %v306, 8.0
        %v309 = vmul.f32 %v307, 8.0
        %310 = vst [vmem:[#allocation2 + $0x20] sm:$0x3] %v308
        %311 = vst [vmem:[#allocation2 + $0x28] sm:$0x3] %v309
        %v312 = vld [vmem:[%s147 + $0x20] sm:$0xc]
        %v313 = vld [vmem:[%s147 + $0x28] sm:$0xc]
        %v314 = vmul.f32 %v312, 1.442695
        %v315 = vpow.pop %v314
        %v316 = vmul.f32 %v313, 1.442695
        %v317 = vpow.pop %v316
        %v318 = vsel %vm180, 33.0, 23.0
        %v320 = vrot.slane %v318, 6
        %v322 = vmul.f32 %v315, %v320
        %v323 = vmul.f32 %v317, %v320
        %324 = vst [vmem:[#allocation2 + $0x20] sm:$0xc] %v322
        %325 = vst [vmem:[#allocation2 + $0x28] sm:$0xc] %v323
        %v326 = vld [vmem:[%s147 + $0x20] sm:$0xf0]
        %v327 = vld [vmem:[%s147 + $0x28] sm:$0xf0]
        %v328 = vxor.u32 %v326, 2147483648
        %v329 = vxor.u32 %v327, 2147483648
        %v330 = vmul.f32 %v328, 1.442695
        %v331 = vpow.pop %v330
        %v332 = vmul.f32 %v329, 1.442695
        %v333 = vpow.pop %v332
        %v334 = vadd.f32 %v331, 1.0
        %v335 = vadd.f32 %v333, 1.0
        %v336 = vrcp.pop %v334
        %v337 = vmul.f32 1.0, %v336
        %v338 = vrcp.pop %v335
        %v339 = vmul.f32 1.0, %v338
        %340 = vst [vmem:[#allocation2 + $0x20] sm:$0xf0] %v337
        %341 = vst [vmem:[#allocation2 + $0x28] sm:$0xf0] %v339
        %v342 = vld [vmem:[#allocation2] sm:$0xff]
        %v343 = vld [vmem:[#allocation2 + $0x8] sm:$0xff]
        %v344 = vld [vmem:[#allocation2 + $0x10] sm:$0xff]
        %v345 = vld [vmem:[#allocation2 + $0x18] sm:$0xff]
        %v346 = vld [vmem:[#allocation2 + $0x20] sm:$0xff]
        %v347 = vld [vmem:[#allocation2 + $0x28] sm:$0xff]
        %348 = vxpose.xlu0.b32.start [1/16] %v342, 128
        %349 = vxpose.xlu0.b32.cont [2/16] %v344, 128
        %350 = vxpose.xlu0.b32.cont [3/16] %v346, 128
        %351 = vxpose.xlu0.b32.cont [4/16] 0.0, 128
        %352 = vxpose.xlu0.b32.cont [5/16] 0.0, 128
        %353 = vxpose.xlu0.b32.cont [6/16] 0.0, 128
        %354 = vxpose.xlu0.b32.cont [7/16] 0.0, 128
        %355 = vxpose.xlu0.b32.cont [8/16] 0.0, 128
        %356 = vxpose.xlu0.b32.cont [9/16] 0.0, 128
        %357 = vxpose.xlu0.b32.cont [10/16] 0.0, 128
        %358 = vxpose.xlu0.b32.cont [11/16] 0.0, 128
        %359 = vxpose.xlu0.b32.cont [12/16] 0.0, 128
        %360 = vxpose.xlu0.b32.cont [13/16] 0.0, 128
        %361 = vxpose.xlu0.b32.cont [14/16] 0.0, 128
        %362 = vxpose.xlu0.b32.cont [15/16] 0.0, 128
        %363 = vxpose.xlu0.b32.end [16/16] 0.0, 128
        %v364 = vpop.trf.xlu0
        %v365 = vpop.trf.xlu0
        %v366 = vpop.trf.xlu0
        %v367 = vpop.trf.xlu0
        %v368 = vpop.trf.xlu0
        %v369 = vpop.trf.xlu0
        %v370 = vpop.trf.xlu0
        %v371 = vpop.trf.xlu0
        %v372 = vpop.trf.xlu0
        %v373 = vpop.trf.xlu0
        %v374 = vpop.trf.xlu0
        %v375 = vpop.trf.xlu0
        %v376 = vpop.trf.xlu0
        %v377 = vpop.trf.xlu0
        %v378 = vpop.trf.xlu0
        %v379 = vpop.trf.xlu0
        %380 = vxpose.xlu0.b32.start [1/16] %v343, 128
        %381 = vxpose.xlu0.b32.cont [2/16] %v345, 128
        %382 = vxpose.xlu0.b32.cont [3/16] %v347, 128
        %383 = vxpose.xlu0.b32.cont [4/16] 0.0, 128
        %384 = vxpose.xlu0.b32.cont [5/16] 0.0, 128
        %385 = vxpose.xlu0.b32.cont [6/16] 0.0, 128
        %386 = vxpose.xlu0.b32.cont [7/16] 0.0, 128
        %387 = vxpose.xlu0.b32.cont [8/16] 0.0, 128
        %388 = vxpose.xlu0.b32.cont [9/16] 0.0, 128
        %389 = vxpose.xlu0.b32.cont [10/16] 0.0, 128
        %390 = vxpose.xlu0.b32.cont [11/16] 0.0, 128
        %391 = vxpose.xlu0.b32.cont [12/16] 0.0, 128
        %392 = vxpose.xlu0.b32.cont [13/16] 0.0, 128
        %393 = vxpose.xlu0.b32.cont [14/16] 0.0, 128
        %394 = vxpose.xlu0.b32.cont [15/16] 0.0, 128
        %395 = vxpose.xlu0.b32.end [16/16] 0.0, 128
        %v396 = vpop.trf.xlu0
        %v397 = vpop.trf.xlu0
        %v398 = vpop.trf.xlu0
        %v399 = vpop.trf.xlu0
        %v400 = vpop.trf.xlu0
        %v401 = vpop.trf.xlu0
        %v402 = vpop.trf.xlu0
        %v403 = vpop.trf.xlu0
        %v404 = vpop.trf.xlu0
        %v405 = vpop.trf.xlu0
        %v406 = vpop.trf.xlu0
        %v407 = vpop.trf.xlu0
        %v408 = vpop.trf.xlu0
        %v409 = vpop.trf.xlu0
        %v410 = vpop.trf.xlu0
        %v411 = vpop.trf.xlu0
        %vm412 = vcmask 195584
        %413 = vst.msk [vmem:[%s176] sm:$0xff] %vm412, %v364
        %414 = vst.msk [vmem:[%s176 + $0x8] sm:$0xff] %vm412, %v365
        %415 = vst.msk [vmem:[%s176 + $0x10] sm:$0xff] %vm412, %v366
        %416 = vst.msk [vmem:[%s176 + $0x18] sm:$0xff] %vm412, %v367
        %417 = vst.msk [vmem:[%s176 + $0x20] sm:$0xff] %vm412, %v368
        %418 = vst.msk [vmem:[%s176 + $0x28] sm:$0xff] %vm412, %v369
        %419 = vst.msk [vmem:[%s176 + $0x30] sm:$0xff] %vm412, %v370
        %420 = vst.msk [vmem:[%s176 + $0x38] sm:$0xff] %vm412, %v371
        %421 = vst.msk [vmem:[%s176 + $0x40] sm:$0xff] %vm412, %v372
        %422 = vst.msk [vmem:[%s176 + $0x48] sm:$0xff] %vm412, %v373
        %423 = vst.msk [vmem:[%s176 + $0x50] sm:$0xff] %vm412, %v374
        %424 = vst.msk [vmem:[%s176 + $0x58] sm:$0xff] %vm412, %v375
        %425 = vst.msk [vmem:[%s176 + $0x60] sm:$0xff] %vm412, %v376
        %426 = vst.msk [vmem:[%s176 + $0x68] sm:$0xff] %vm412, %v377
        %427 = vst.msk [vmem:[%s176 + $0x70] sm:$0xff] %vm412, %v378
        %428 = vst.msk [vmem:[%s176 + $0x78] sm:$0xff] %vm412, %v379
        %429 = vst.msk [vmem:[%s176 + $0x80] sm:$0xff] %vm412, %v396
        %430 = vst.msk [vmem:[%s176 + $0x88] sm:$0xff] %vm412, %v397
        %431 = vst.msk [vmem:[%s176 + $0x90] sm:$0xff] %vm412, %v398
        %432 = vst.msk [vmem:[%s176 + $0x98] sm:$0xff] %vm412, %v399
        %433 = vst.msk [vmem:[%s176 + $0xa0] sm:$0xff] %vm412, %v400
        %434 = vst.msk [vmem:[%s176 + $0xa8] sm:$0xff] %vm412, %v401
        %435 = vst.msk [vmem:[%s176 + $0xb0] sm:$0xff] %vm412, %v402
        %436 = vst.msk [vmem:[%s176 + $0xb8] sm:$0xff] %vm412, %v403
        %437 = vst.msk [vmem:[%s176 + $0xc0] sm:$0xff] %vm412, %v404
        %438 = vst.msk [vmem:[%s176 + $0xc8] sm:$0xff] %vm412, %v405
        %439 = vst.msk [vmem:[%s176 + $0xd0] sm:$0xff] %vm412, %v406
        %440 = vst.msk [vmem:[%s176 + $0xd8] sm:$0xff] %vm412, %v407
        %441 = vst.msk [vmem:[%s176 + $0xe0] sm:$0xff] %vm412, %v408
        %442 = vst.msk [vmem:[%s176 + $0xe8] sm:$0xff] %vm412, %v409
        %443 = vst.msk [vmem:[%s176 + $0xf0] sm:$0xff] %vm412, %v410
        %444 = vst.msk [vmem:[%s176 + $0xf8] sm:$0xff] %vm412, %v411
        %p445 = scmp.lt.s32.totalorder %s17, 1
        %s446 = scalar_select %p445, %s17, 1
        %s447 = smul.addr %s446, 32
        %s448 = smul.addr %s447, 8
        %s449 = scalar_lea.vmem %s2, %s448
        // Predicated region
        $region37: #{tpu_custom_call.1} parent=27 // pred_check
          %p450 = pneg %p82
        $region38: #{tpu_custom_call.1} parent=27 // pred_check_branch
          %452 = sbr.rel (%p450) target = $region40
        $region39: #{tpu_custom_call.1} parent=27 // pred_region
          _
        $region40: #{tpu_custom_call.1} parent=27 // pred_fallthru
          _
      $region28: #{tpu_custom_call.1} parent=5 // pred_fallthru
        _
      %p453 = scmp.le.s32.totalorder 2, %s12
      // Predicated region
      $region41: #{tpu_custom_call.1} parent=5 // pred_check
        %p454 = pneg %p453
      $region42: #{tpu_custom_call.1} parent=5 // pred_check_branch
        %456 = sbr.rel (%p454) target = $region44
      $region43: #{tpu_custom_call.1} parent=5 // pred_region
        %s457 = ssub.s32 %s12, 2
        // Predicated region
        $region45: #{tpu_custom_call.1} parent=43 // pred_check
          %p458 = pneg %p88
        $region46: #{tpu_custom_call.1} parent=43 // pred_check_branch
          %460 = sbr.rel (%p458) target = $region48
        $region47: #{tpu_custom_call.1} parent=43 // pred_region
          %p461 = scmp.lt.s32.totalorder %s18, 1
          %s462 = scalar_select %p461, %s18, 1
          %s463 = smul.addr %s462, 32
          %s464 = smul.addr %s463, 8
          %s465 = scalar_lea.vmem %s2, %s464
        $region48: #{tpu_custom_call.1} parent=43 // pred_fallthru
          _
      $region44: #{tpu_custom_call.1} parent=5 // pred_fallthru
        _
    $region6: #{tpu_custom_call.1} parent=1 // loop_footer
      %s16 = sadd.s32 1, %s12
    $region7: #{tpu_custom_call.1} parent=1 // loop_footer_branch
      %11 = sbr.rel target = $region3
    $region8: #{tpu_custom_call.1} parent=1 // loop_exit
      _
    %466 = vsyncpa [#allocation4], 1
    %s467 = scalar_lea.sflag [#allocation4], 1
    %468 = vsyncpa %s467, 1
    %469 = vsyncpa [#allocation6], 1

</llo_original>
